<compile_context>
chip_gen: v7x
topology: tpu7x:2x2x1
jax: 0.10.0
libtpu: 0.0.40
codegen_flags: <defaults>
</compile_context>

<pallas_src>
import functools
import math

import jax
import jax.numpy as jnp
from jax.experimental import pallas as pl
from jax.experimental.pallas import tpu as pltpu


# --------------------------- hardware-aware sizing ---------------------------


def _hw_params():
    """Generation-aware tile / scoped-VMEM sizing.

    v5e / v6e (128 MiB physical VMEM): ~8 MiB f32 output tiles, 48 MiB limit.
    v7x (64 MiB per TC): cap at ~4 MiB tiles / 40 MiB limit so double-buffered
    inputs + outputs + Mosaic internal scratch stay under 64 MiB.
    """
    try:
        vmem_bytes = int(pltpu.get_tpu_info().vmem_capacity_bytes)
    except Exception:
        vmem_bytes = 64 * 1024 * 1024            # conservative (v7x) fallback
    if vmem_bytes >= 100 * 1024 * 1024:          # v5e / v6e (128 MiB)
        return {"max_out_tile_elems": 2 * 1024 * 1024,     # 8 MiB f32 tile
                "vmem_limit_bytes": 48 * 1024 * 1024}
    return {"max_out_tile_elems": 1 * 1024 * 1024,         # 4 MiB f32 tile
            "vmem_limit_bytes": 40 * 1024 * 1024}


# ----------------------------- Pallas kernels ------------------------------


def _linear_kernel(x_ref, w_ref, b_ref, o_ref, *, apply_sigmoid):
    # y = x @ W + b  (optionally sigmoid), one row-tile per grid step.
    y = (
        jnp.dot(x_ref[...], w_ref[...], preferred_element_type=jnp.float32)
        + b_ref[...]
    )
    if apply_sigmoid:
        y = jax.nn.sigmoid(y)                    # EUP transcendental
    o_ref[...] = y.astype(o_ref.dtype)


def _soft_bcast_kernel(v_ref, t_ref, o_ref, *, rep, chunk):
    # v_ref: (TBv, L)     lane-replicated sigmoid gate (resident; reused).
    # t_ref: (1, TBt*D)   text tile, flattened row-major.
    # o_ref: (TBv, TBt*D) lane-dense output tile.
    gate = v_ref[...]
    for c in range(rep):                         # static, 128-aligned chunks
        sl = slice(c * chunk, (c + 1) * chunk)
        # Per-chunk ref slice (not a pre-loaded tile) keeps vregs bounded.
        o_ref[:, sl] = (gate * t_ref[:, sl]).astype(o_ref.dtype)


def _sim_bcast_kernel(v_ref, t_ref, o_ref, *, rep, chunk):
    # out[i, j*D+d] = sigmoid(vproj[i,d] * tproj[j,d]) * tproj[j,d]
    vproj = v_ref[...]                           # (TBv, L) lane-replicated
    for c in range(rep):
        sl = slice(c * chunk, (c + 1) * chunk)
        tc = t_ref[:, sl]
        sims = vproj * tc
        o_ref[:, sl] = (jax.nn.sigmoid(sims) * tc).astype(o_ref.dtype)


def _fusion_bcast_kernel(v_ref, t1_ref, t2_ref, o_ref, *, rep, chunk):
    # out[i, j*D+d] = sigmoid(vp1[i,d] + tp1[j,d]) * (vp2[i,d] + tp2[j,d])
    v1 = v_ref[:, :chunk]                        # (TBv, L)
    v2 = v_ref[:, chunk:]                        # (TBv, L)
    for c in range(rep):
        sl = slice(c * chunk, (c + 1) * chunk)
        h1 = jax.nn.sigmoid(v1 + t1_ref[:, sl])  # biases ride with text
        h2 = v2 + t2_ref[:, sl]
        o_ref[:, sl] = (h1 * h2).astype(o_ref.dtype)


# ------------------------------ host wrappers -------------------------------


def _linear(x, w, b, *, sigmoid=False, vmem_limit=None):
    """Row-tiled projection: tiny vs the O(Bv*Bt*D) output, but VMEM-robust."""
    rows, k = x.shape
    cols = w.shape[1]
    tm = rows if rows <= 512 else 256            # multiple of 8 or full extent
    grid = (pl.cdiv(rows, tm),)
    return pl.pallas_call(
        functools.partial(_linear_kernel, apply_sigmoid=sigmoid),
        out_shape=jax.ShapeDtypeStruct((rows, cols), jnp.float32),
        grid_spec=pltpu.PrefetchScalarGridSpec(
            num_scalar_prefetch=0,
            grid=grid,
            in_specs=[pl.BlockSpec((tm, k), lambda i: (i, 0)),
                      pl.BlockSpec((k, cols), lambda i: (0, 0)),
                      pl.BlockSpec((1, cols), lambda i: (0, 0))],
            out_specs=pl.BlockSpec((tm, cols), lambda i: (i, 0)),
        ),
        compiler_params=pltpu.CompilerParams(
            dimension_semantics=("parallel",),
            vmem_limit_bytes=vmem_limit,
        ),
    )(x, w, b)


def _pick_tiles(bv, bt, d, k_rep, max_out_tile_elems, max_lane_width=4096):
    """Pick (TBv, TBt) and padded extents so the flattened output tile is
    lane-dense, a few MiB, and yields >= 2 grid steps for v7x megacore."""
    L = k_rep * d                                # multiple of 128 by construction
    if L > max_lane_width:
        # TODO(synk): pad D to a multiple of 128 (k_rep=1) for lane-hostile dims
        # (e.g. D=300) instead of lcm-based replication.
        raise NotImplementedError(
            f"dim={d} gives replication width L={L} > {max_lane_width}")

    # Text tile: prefer a divisor of bt that is a multiple of k_rep.
    tbt = None
    for t in range(bt, 0, -1):
        if bt % t == 0 and t % k_rep == 0 and t * d <= max_lane_width:
            tbt = t
            break
    if tbt is None:                              # pad batch_t instead of failing
        tbt = (max_lane_width // L) * k_rep
        tbt = min(tbt, ((bt + k_rep - 1) // k_rep) * k_rep)
    bt_pad = ((bt + tbt - 1) // tbt) * tbt

    # Visual tile: multiple of 8 sublanes or full extent; cap the output tile.
    max_rows = max(8, max_out_tile_elems // (tbt * d))
    tbv = None
    for t in range(min(bv, max_rows), 0, -1):
        if bv % t == 0 and (t % 8 == 0 or t == bv):
            tbv = t
            break
    if tbv is None:                              # pad batch_v instead of failing
        tbv = min(8 * max(1, max_rows // 8), ((bv + 7) // 8) * 8)
    bv_pad = ((bv + tbv - 1) // tbv) * tbv

    # Megacore load balance (v7x has 2 TensorCores): ensure >= 2 grid steps.
    while (bv_pad // tbv) * (bt_pad // tbt) < 2:
        if (tbt > k_rep and (tbt // 2) % k_rep == 0 and bt_pad % (tbt // 2) == 0):
            tbt //= 2
        elif tbv % 16 == 0 and bv_pad % (tbv // 2) == 0:
            tbv //= 2
        else:
            break
    return tbv, tbt, bv_pad, bt_pad


def _pad_rows(x, rows_pad):
    if x.shape[0] == rows_pad:
        return x
    return jnp.pad(x, ((0, rows_pad - x.shape[0]), (0, 0)))


def _broadcast_call(kernel, v_rep, t_flats, out_dtype,
                    bv, bt, d, tbv, tbt, L, bv_pad, bt_pad, vmem_limit):
    rep = (tbt * d) // L
    # Grid order: i (visual) outer, j (text) INNERMOST.  The gate block has
    # index_map (i, 0), so Pallas skips its re-DMA while j varies and only the
    # small text tile is refetched per step.  Do not reorder.
    grid = (bv_pad // tbv, bt_pad // tbt)
    v_spec = pl.BlockSpec((tbv, v_rep.shape[1]), lambda i, j: (i, 0))
    t_specs = [pl.BlockSpec((1, tbt * d), lambda i, j: (0, j)) for _ in t_flats]
    out_spec = pl.BlockSpec((tbv, tbt * d), lambda i, j: (i, j))
    flat = pl.pallas_call(
        functools.partial(kernel, rep=rep, chunk=L),
        out_shape=jax.ShapeDtypeStruct((bv_pad, bt_pad * d), out_dtype),
        grid_spec=pltpu.PrefetchScalarGridSpec(
            num_scalar_prefetch=0,
            grid=grid,
            in_specs=[v_spec] + t_specs,
            out_specs=out_spec,
        ),
        compiler_params=pltpu.CompilerParams(
            dimension_semantics=("parallel", "parallel"),
            vmem_limit_bytes=vmem_limit,
        ),
    )(v_rep, *t_flats)
    out = flat.reshape(bv_pad, bt_pad, d)        # free metadata reshape
    if bv_pad != bv or bt_pad != bt:
        out = out[:bv, :bt, :]
    return out


class CrossAttentionPallas:
    """JAX/Pallas port of CrossAttention.  Deterministic synthetic parameters."""

    def __init__(self, att_type: str, dim: int, key: jax.Array):
        self.att_type = att_type
        self.dim = dim
        d = dim
        # Lane-replication factor: visual projections are widened to
        # L = lcm(D, 128) columns ON THE WEIGHTS at init time (zero runtime cost).
        self.k_rep = 128 // math.gcd(d, 128)
        self.L = d * self.k_rep

        def lin(k, fan_in, fan_out):
            kw, kb = jax.random.split(k)
            scale = 1.0 / jnp.sqrt(fan_in)
            # Stored (fan_in, fan_out) == torch (fan_out, fan_in) transposed.
            w = jax.random.uniform(kw, (fan_in, fan_out), jnp.float32, -scale, scale)
            b = jax.random.uniform(kb, (1, fan_out), jnp.float32, -scale, scale)
            return w, b

        ks = jax.random.split(key, 4)
        if att_type == "soft_att":
            self.w, self.b = lin(ks[0], d, d)
            self.w_rep = jnp.tile(self.w, (1, self.k_rep))            # (D, L)
            self.b_rep = jnp.tile(self.b, (1, self.k_rep))            # (1, L)
        elif att_type == "fusion_att":
            self.w1, self.b1 = lin(ks[0], 2 * d, d)
            self.w2, self.b2 = lin(ks[1], 2 * d, d)
            w1v, w1t = self.w1[:d], self.w1[d:]
            w2v, w2t = self.w2[:d], self.w2[d:]
            # Visual half: both projections fused along N and lane-replicated.
            self.wv_rep = jnp.concatenate(
                [jnp.tile(w1v, (1, self.k_rep)), jnp.tile(w2v, (1, self.k_rep))],
                axis=1)                                                # (D, 2L)
            self.bv_zero = jnp.zeros((1, 2 * self.L), jnp.float32)
            # Text half: both projections fused along N; biases ride with text.
            self.wt_cat = jnp.concatenate([w1t, w2t], axis=1)          # (D, 2D)
            self.bt_cat = jnp.concatenate([self.b1, self.b2], axis=1)  # (1, 2D)
        elif att_type == "similarity_att":
            self.wv, self.bv = lin(ks[0], d, d)
            self.wt, self.bt = lin(ks[1], d, d)
            self.wv_rep = jnp.tile(self.wv, (1, self.k_rep))           # (D, L)
            self.bv_rep = jnp.tile(self.bv, (1, self.k_rep))           # (1, L)
        else:
            raise Exception(f"unknown att_type {att_type}")

    def __call__(self, visual: jax.Array, text: jax.Array,
                 out_dtype=None) -> jax.Array:
        # out_dtype=jnp.bfloat16 halves HBM write traffic of the store-bound
        # broadcast stage (~2x wall-clock) if downstream tolerates bf16.
        bv, bt, d = visual.shape[0], text.shape[0], self.dim
        out_dtype = visual.dtype if out_dtype is None else jnp.dtype(out_dtype)
        hw = _hw_params()
        vl = hw["vmem_limit_bytes"]
        tbv, tbt, bv_pad, bt_pad = _pick_tiles(
            bv, bt, d, self.k_rep, hw["max_out_tile_elems"])
        L = self.L

        if self.att_type == "soft_att":
            # Projection hoisted out of the (i, j) tile loop: one tiny matmul.
            gate = _linear(visual, self.w_rep, self.b_rep,
                           sigmoid=True, vmem_limit=vl)                # (Bv, L)
            gate = _pad_rows(gate, bv_pad)
            t_flat = _pad_rows(text, bt_pad).reshape(1, bt_pad * d)
            return _broadcast_call(_soft_bcast_kernel, gate, [t_flat], out_dtype,
                                   bv, bt, d, tbv, tbt, L, bv_pad, bt_pad, vl)
        elif self.att_type == "fusion_att":
            v_rep = _pad_rows(
                _linear(visual, self.wv_rep, self.bv_zero, vmem_limit=vl),
                bv_pad)                                                # (Bvp, 2L)
            tproj = _pad_rows(
                _linear(text, self.wt_cat, self.bt_cat, vmem_limit=vl),
                bt_pad)                                                # (Btp, 2D)
            t1 = tproj[:, :d].reshape(1, bt_pad * d)
            t2 = tproj[:, d:].reshape(1, bt_pad * d)
            return _broadcast_call(_fusion_bcast_kernel, v_rep, [t1, t2],
                                   out_dtype, bv, bt, d, tbv, tbt, L,
                                   bv_pad, bt_pad, vl)
        else:  # similarity_att
            v_rep = _pad_rows(
                _linear(visual, self.wv_rep, self.bv_rep, vmem_limit=vl),
                bv_pad)                                                # (Bvp, L)
            tproj = _pad_rows(
                _linear(text, self.wt, self.bt, vmem_limit=vl), bt_pad)
            t_flat = tproj.reshape(1, bt_pad * d)
            return _broadcast_call(_sim_bcast_kernel, v_rep, [t_flat], out_dtype,
                                   bv, bt, d, tbv, tbt, L, bv_pad, bt_pad, vl)

    # Pure-JAX reference (mirrors the PyTorch forward exactly).
    def reference(self, visual, text):
        if self.att_type == "soft_att":
            gate = jax.nn.sigmoid(visual @ self.w + self.b)
            return gate[:, None, :] * text[None, :, :]
        elif self.att_type == "fusion_att":
            bv, bt = visual.shape[0], text.shape[0]
            v_e = jnp.broadcast_to(visual[:, None, :], (bv, bt, self.dim))
            t_e = jnp.broadcast_to(text[None, :, :], (bv, bt, self.dim))
            fusion = jnp.concatenate([v_e, t_e], axis=-1)
            h1 = jax.nn.sigmoid(fusion @ self.w1 + self.b1)
            h2 = fusion @ self.w2 + self.b2
            return h1 * h2
        else:
            vproj = visual @ self.wv + self.bv
            tproj = text @ self.wt + self.bt
            sims = vproj[:, None, :] * tproj[None, :, :]
            return jax.nn.sigmoid(sims) * tproj[None, :, :]


# ---------------------------------- main -------------------------------------


if __name__ == "__main__":
    key = jax.random.PRNGKey(0)
    k_v, k_t, k_p1, k_p2, k_p3 = jax.random.split(key, 5)

    batch_v, batch_t, dim = 4, 8, 32
    visual = jax.random.normal(k_v, (batch_v, dim), jnp.float32)
    text = jax.random.normal(k_t, (batch_t, dim), jnp.float32)

    ok = True
    for att_type, kp in (
        ("soft_att", k_p1),
        ("fusion_att", k_p2),
        ("similarity_att", k_p3),
    ):
        mod = CrossAttentionPallas(att_type, dim, kp)
        ref = mod.reference(visual, text)

        # f32 output: exact semantics match.
        out = jax.block_until_ready(mod(visual, text))
        if out.shape != (batch_v, batch_t, dim):
            ok = False
        if not jnp.allclose(out, ref, atol=1e-5, rtol=1e-5):
            ok = False

        # bf16 output: halves the HBM-store-bound traffic (perf-review item).
        out_bf16 = jax.block_until_ready(mod(visual, text, out_dtype=jnp.bfloat16))
        if out_bf16.dtype != jnp.bfloat16:
            ok = False
        if not jnp.allclose(out_bf16.astype(jnp.float32), ref,
                            atol=5e-2, rtol=5e-2):
            ok = False

    if ok:
        print("KERNEL_OK")
</pallas_src>

<mosaic_0001>
module attributes {stable_mosaic.version = 11 : i64} {
  func.func @_linear_kernel(%arg0: i32, %arg1: memref<4x32xf32, #tpu.memory_space<vmem>>, %arg2: memref<32x128xf32, #tpu.memory_space<vmem>>, %arg3: memref<1x128xf32, #tpu.memory_space<vmem>>, %arg4: memref<4x128xf32, #tpu.memory_space<vmem>>) attributes {dimension_semantics = [#tpu.dimension_semantics<parallel>], iteration_bounds = array<i64: 1>, scalar_prefetch = 0 : i64, scratch_operands = 0 : i64, tpu.core_type = #tpu.core_type<tc>, window_params = [{transform_indices = @transform_0, window_bounds = array<i64: 4, 32>}, {pipeline_mode = #tpu.pipeline_mode<synchronous>, transform_indices = @transform_1, window_bounds = array<i64: 32, 128>}, {pipeline_mode = #tpu.pipeline_mode<synchronous>, transform_indices = @transform_2, window_bounds = array<i64: 1, 128>}, {transform_indices = @transform_3, window_bounds = array<i64: 4, 128>}]} {
    %c0 = arith.constant 0 : index
    %c0_0 = arith.constant 0 : index
    %0 = vector.load %arg1[%c0, %c0_0] : memref<4x32xf32, #tpu.memory_space<vmem>>, vector<4x32xf32>
    %c0_1 = arith.constant 0 : index
    %c0_2 = arith.constant 0 : index
    %1 = vector.load %arg2[%c0_1, %c0_2] : memref<32x128xf32, #tpu.memory_space<vmem>>, vector<32x128xf32>
    %cst = arith.constant dense<0.000000e+00> : vector<4x128xf32>
    %2 = tpu.matmul %0, %1, %cst {dimension_numbers = #tpu.dot_dimension_numbers<[1], [0], [0], [1], [0, 0, 1, 1], [], []>} : vector<4x32xf32>, vector<32x128xf32>, vector<4x128xf32> -> vector<4x128xf32>
    %c0_3 = arith.constant 0 : index
    %c0_4 = arith.constant 0 : index
    %3 = vector.load %arg3[%c0_3, %c0_4] : memref<1x128xf32, #tpu.memory_space<vmem>>, vector<1x128xf32>
    %4 = vector.broadcast %3 : vector<1x128xf32> to vector<4x128xf32>
    %5 = arith.addf %2, %4 : vector<4x128xf32>
    %6 = arith.negf %5 : vector<4x128xf32>
    %7 = math.exp %6 : vector<4x128xf32>
    %cst_5 = arith.constant 1.000000e+00 : f32
    %8 = vector.broadcast %cst_5 : f32 to vector<4x128xf32>
    %9 = arith.addf %8, %7 : vector<4x128xf32>
    %10 = arith.divf %8, %9 : vector<4x128xf32>
    %c0_6 = arith.constant 0 : index
    %c0_7 = arith.constant 0 : index
    %11 = vector.load %arg4[%c0_6, %c0_7] : memref<4x128xf32, #tpu.memory_space<vmem>>, vector<4x128xf32>
    tpu.vector_store %arg4[%c0_6, %c0_7], %10 {strides = array<i32>} : memref<4x128xf32, #tpu.memory_space<vmem>>, vector<4x128xf32>,
    return
  }
  func.func @transform_0(%arg0: i32) -> (i32, i32) {
    %c0_i32 = arith.constant 0 : i32
    %c0_i32_0 = arith.constant 0 : i32
    return %arg0, %c0_i32 : i32, i32
  }
  func.func @transform_1(%arg0: i32) -> (i32, i32) {
    %c0_i32 = arith.constant 0 : i32
    %c0_i32_0 = arith.constant 0 : i32
    %c0_i32_1 = arith.constant 0 : i32
    return %c0_i32, %c0_i32_0 : i32, i32
  }
  func.func @transform_2(%arg0: i32) -> (i32, i32) {
    %c0_i32 = arith.constant 0 : i32
    %c0_i32_0 = arith.constant 0 : i32
    %c0_i32_1 = arith.constant 0 : i32
    return %c0_i32, %c0_i32_0 : i32, i32
  }
  func.func @transform_3(%arg0: i32) -> (i32, i32) {
    %c0_i32 = arith.constant 0 : i32
    %c0_i32_0 = arith.constant 0 : i32
    return %arg0, %c0_i32 : i32, i32
  }
}

</mosaic_0001>

<llo_original>
// kernel: tpu_custom_call.1
$region0: #{tpu_custom_call.1}
  #allocation0 [shape = 'u32[]', space=smem, size = 0x4, offset = 0x4, fixed_abs, tag = 'smem constant byte address 0x4 - core index']
  #allocation1 [shape = 'u32[144,128]{1,0:T(1,128)}', space=vmem, size = 0x12000, scoped, tag = 'internal scratch']
  %s0 = inlined_call_operand.hbm [shape: f32[4,32], index: 0, kind: input, shape index: {}]
  %s1 = inlined_call_operand.hbm [shape: f32[32,128], index: 1, kind: input, shape index: {}]
  %s2 = inlined_call_operand.vmem [shape: f32[1,128], index: 2, kind: input, shape index: {}]
  %s3 = inlined_call_operand.hbm [shape: f32[4,128], index: 3, kind: output, shape index: {}]
  %s4 = sld [smem:[#allocation0]]
  $region30: #{tpu_custom_call.1} parent=0
    _
  %s6 = ssub.s32 1, %s4
  %s7 = scalar_select 0, %s6, %s4
  $region1: #{tpu_custom_call.1} parent=0
    #allocation2 [shape = 'u8[2048]{0}', space=vmem, size = 0x800, scoped, tag = 'input window, operand 0, single buffered']
    #allocation3 [shape = 's32[1]{0}', space=sflag, size = 0x4, scoped, tag = 'scoped memory for tpu_custom_call.1']
    #allocation4 [shape = 's32[1]{0}', space=sflag, size = 0x4, scoped, tag = 'scoped memory for tpu_custom_call.1']
    #allocation5 [shape = 'u8[16384]{0}', space=vmem, size = 0x4000, scoped, tag = 'input window, operand 1, single buffered']
    #allocation6 [shape = 's32[1]{0}', space=sflag, size = 0x4, scoped, tag = 'scoped memory for tpu_custom_call.1']
    #allocation7 [shape = 'u8[2048]{0}', space=vmem, size = 0x800, scoped, tag = 'output window, operand 0, single buffered']
    %8 = vsyncpa [#allocation3], 0
    %9 = vsyncpa [#allocation6], 0
    %10 = vsyncpa [#allocation4], 0
    // Predicated region
    $region2: #{tpu_custom_call.1} parent=1 // pred_check
      _
    $region3: #{tpu_custom_call.1} parent=1 // pred_check_branch
      %12 = sbr.rel (0) target = $region5
    $region4: #{tpu_custom_call.1} parent=1 // pred_region
      %s14 = ssub.s32 64, 64
      %15 = vsyncadd [#allocation3], %s14
      %s17 = sshll.u32 [#allocation2], 4
      %s18 = int_to_ptr.vmem [resolvable:$true] %s17
      %20 = dma.hbm_to_vmem [thread:$0]  %s0, 64, %s18, [#allocation3]
    $region5: #{tpu_custom_call.1} parent=1 // pred_fallthru
      _
    // Predicated region
    $region6: #{tpu_custom_call.1} parent=1 // pred_check
      _
    $region7: #{tpu_custom_call.1} parent=1 // pred_check_branch
      %22 = sbr.rel (0) target = $region9
    $region8: #{tpu_custom_call.1} parent=1 // pred_region
      %s24 = ssub.s32 512, 512
      %25 = vsyncadd [#allocation6], %s24
      %s26 = sshll.u32 [#allocation5], 4
      %s27 = int_to_ptr.vmem [resolvable:$true] %s26
      %32 = dma.hbm_to_vmem [thread:$0]  %s1, 512, %s27, [#allocation6], 128, 128, 8
    $region9: #{tpu_custom_call.1} parent=1 // pred_fallthru
      _
    // Predicated region
    $region10: #{tpu_custom_call.1} parent=1 // pred_check
      _
    $region11: #{tpu_custom_call.1} parent=1 // pred_check_branch
      %34 = sbr.rel (0) target = $region13
    $region12: #{tpu_custom_call.1} parent=1 // pred_region
      _
    $region13: #{tpu_custom_call.1} parent=1 // pred_fallthru
      _
    // Predicated region
    $region14: #{tpu_custom_call.1} parent=1 // pred_check
      _
    $region15: #{tpu_custom_call.1} parent=1 // pred_check_branch
      %36 = sbr.rel (0) target = $region17
    $region16: #{tpu_custom_call.1} parent=1 // pred_region
      %37 = dma.done [#allocation3], 64
    $region17: #{tpu_custom_call.1} parent=1 // pred_fallthru
      _
    // Predicated region
    $region18: #{tpu_custom_call.1} parent=1 // pred_check
      _
    $region19: #{tpu_custom_call.1} parent=1 // pred_check_branch
      %39 = sbr.rel (0) target = $region21
    $region20: #{tpu_custom_call.1} parent=1 // pred_region
      %40 = dma.done [#allocation6], 512
    $region21: #{tpu_custom_call.1} parent=1 // pred_fallthru
      _
    %v41 = vld [vmem:[#allocation2] sm:$0xf]
    %v42 = vld [vmem:[#allocation5] sm:$0xff]
    %v43 = vld [vmem:[#allocation5 + $0x8] sm:$0xff]
    %v44 = vld [vmem:[#allocation5 + $0x10] sm:$0xff]
    %v45 = vld [vmem:[#allocation5 + $0x18] sm:$0xff]
    %v46 = vld [vmem:[%s2] sm:$0x1]
    %v48 = vlaneseq
    %v49 = vshrl.u32 %v48, 7
    %v50 = vsub.s32 0, %v49
    %v51 = vrot.slane %v46, %v50
    %vm53 = vcmask 261120
    %v55 = vsel %vm53, %v41, 0
    %57 = vmatprep.subr.mxu0 0.0
    %58 = vmatpush1.msra.mxu0 %v42
    %59 = vmatprep.subr.mxu0 0.0
    %60 = vmatpush1.msra.mxu0 %v43
    %61 = vmatprep.subr.mxu0 0.0
    %62 = vmatpush1.msra.mxu0 %v44
    %63 = vmatprep.subr.mxu0 0.0
    %64 = vmatpush1.msra.mxu0 %v45
    %65 = vmatprep.subr.mxu0 0.0
    %66 = vmatpush1.msra.mxu0 0.0
    %67 = vmatprep.subr.mxu0 0.0
    %68 = vmatpush1.msra.mxu0 0.0
    %69 = vmatprep.subr.mxu0 0.0
    %70 = vmatpush1.msra.mxu0 0.0
    %71 = vmatprep.subr.mxu0 0.0
    %72 = vmatpush1.msra.mxu0 0.0
    %73 = vmatprep.subr.mxu0 0.0
    %74 = vmatpush1.msra.mxu0 0.0
    %75 = vmatprep.subr.mxu0 0.0
    %76 = vmatpush1.msra.mxu0 0.0
    %77 = vmatprep.subr.mxu0 0.0
    %78 = vmatpush1.msra.mxu0 0.0
    %79 = vmatprep.subr.mxu0 0.0
    %80 = vmatpush1.msra.mxu0 0.0
    %81 = vmatprep.subr.mxu0 0.0
    %82 = vmatpush1.msra.mxu0 0.0
    %83 = vmatprep.subr.mxu0 0.0
    %84 = vmatpush1.msra.mxu0 0.0
    %85 = vmatprep.subr.mxu0 0.0
    %86 = vmatpush1.msra.mxu0 0.0
    %87 = vmatprep.subr.mxu0 0.0
    %88 = vmatpush1.msra.mxu0 0.0
    %89 = vmatprep.subr.mxu0 0.0
    %90 = vmatpush1.msra.mxu0 0.0
    %91 = vmatprep.subr.mxu0 0.0
    %92 = vmatpush1.msra.mxu0 0.0
    %93 = vmatprep.subr.mxu0 0.0
    %94 = vmatpush1.msra.mxu0 0.0
    %95 = vmatprep.subr.mxu0 0.0
    %96 = vmatpush1.msra.mxu0 0.0
    %97 = vmatprep.subr.mxu0 0.0
    %98 = vmatpush1.msra.mxu0 0.0
    %99 = vmatprep.subr.mxu0 0.0
    %100 = vmatpush1.msra.mxu0 0.0
    %101 = vmatprep.subr.mxu0 0.0
    %102 = vmatpush1.msra.mxu0 0.0
    %103 = vmatprep.subr.mxu0 0.0
    %104 = vmatpush1.msra.mxu0 0.0
    %105 = vmatprep.subr.mxu0 0.0
    %106 = vmatpush1.msra.mxu0 0.0
    %107 = vmatprep.subr.mxu0 0.0
    %108 = vmatpush1.msra.mxu0 0.0
    %109 = vmatprep.subr.mxu0 0.0
    %110 = vmatpush1.msra.mxu0 0.0
    %111 = vmatprep.subr.mxu0 0.0
    %112 = vmatpush1.msra.mxu0 0.0
    %113 = vmatprep.subr.mxu0 0.0
    %114 = vmatpush1.msra.mxu0 0.0
    %115 = vmatprep.subr.mxu0 0.0
    %116 = vmatpush1.msra.mxu0 0.0
    %117 = vmatprep.subr.mxu0 0.0
    %118 = vmatpush1.msra.mxu0 0.0
    %119 = vmatprep.subr.mxu0 0.0
    %120 = vmatpush1.msra.mxu0 0.0
    %121 = vmatprep.mubr.f32.mxu0 0.0
    %122 = vmatmul.mubr.f32.gmra.mrb[0].mxu0 %v55
    %v123 = vpop.f32.mrb[0].mxu0
    %v124 = vadd.f32 %v51, %v123
    %v125 = vpop.f32.mrb[0].mxu0
    %126 = vdwg.mxu0
    %v127 = vxor.u32 %v124, 2147483648
    %v128 = vmul.f32 %v127, 1.442695
    %v129 = vpow.pop %v128
    %v130 = vadd.f32 %v129, 1.0
    %v131 = vrcp.pop %v130
    %v132 = vmul.f32 1.0, %v131
    %133 = vst [vmem:[#allocation7] sm:$0xf] %v132
    // Predicated region
    $region22: #{tpu_custom_call.1} parent=1 // pred_check
      _
    $region23: #{tpu_custom_call.1} parent=1 // pred_check_branch
      %135 = sbr.rel (0) target = $region25
    $region24: #{tpu_custom_call.1} parent=1 // pred_region
      %s137 = ssub.s32 64, 64
      %138 = vsyncadd [#allocation4], %s137
      %s140 = sshll.u32 [#allocation7], 4
      %s141 = int_to_ptr.vmem [resolvable:$true] %s140
      %143 = dma.vmem_to_hbm [thread:$0]  %s141, 64, %s3, [#allocation4]
    $region25: #{tpu_custom_call.1} parent=1 // pred_fallthru
      _
    // Predicated region
    $region26: #{tpu_custom_call.1} parent=1 // pred_check
      _
    $region27: #{tpu_custom_call.1} parent=1 // pred_check_branch
      %145 = sbr.rel (0) target = $region29
    $region28: #{tpu_custom_call.1} parent=1 // pred_region
      %146 = dma.done [#allocation4], 64
    $region29: #{tpu_custom_call.1} parent=1 // pred_fallthru
      _
    %147 = vsyncpa [#allocation3], 1
    %148 = vsyncpa [#allocation6], 1
    %149 = vsyncpa [#allocation4], 1

</llo_original>
